<compile_context>
chip_gen: v5e
topology: v5e:2x2
jax: 0.10.0
libtpu: 0.0.40
codegen_flags: <defaults>
</compile_context>

<pallas_src>
import math

import numpy as np

import jax
import jax.numpy as jnp
from jax.experimental import pallas as pl
from jax.experimental.pallas import tpu as pltpu


def _round_up(x, m):
    return ((x + m - 1) // m) * m


# ---------------------------------------------------------------------------
# Kernel
# ---------------------------------------------------------------------------
def _timestep_embedder_kernel(t_ref, freqs_ref, w1c_ref, w1s_ref, b1_ref,
                              w2_ref, b2_ref, out_ref):
    # t_ref:     (TILE_N, 1)       f32
    # freqs_ref: (1, half)         f32
    # w1c_ref:   (half, H_pad)     bf16   (rows of w1 paired with cos(args))
    # w1s_ref:   (half, H_pad)     bf16   (rows of w1 paired with sin(args))
    # b1_ref:    (1, H_pad)        f32
    # w2_ref:    (H_pad, H_pad)    bf16
    # b2_ref:    (1, H_pad)        f32
    # out_ref:   (TILE_N, H_pad)   f32
    t = t_ref[...]                                   # (TILE_N, 1)
    freqs = freqs_ref[...]                           # (1, half)
    args = t * freqs                                 # (TILE_N, half), f32

    # Sinusoidal embedding, kept split so no lane-axis concat is needed.
    # Transcendentals in f32 (v5e EUP has no bf16); downcast only dot inputs.
    cos_e = jnp.cos(args).astype(jnp.bfloat16)
    sin_e = jnp.sin(args).astype(jnp.bfloat16)

    # Linear 1:  emb @ w1  ==  cos @ w1[:half] + sin @ w1[half:]
    h = jnp.dot(cos_e, w1c_ref[...], preferred_element_type=jnp.float32)
    h = h + jnp.dot(sin_e, w1s_ref[...], preferred_element_type=jnp.float32)
    h = h + b1_ref[...]                              # f32

    # SiLU in f32.
    h = h * jax.nn.sigmoid(h)

    # Linear 2 (bf16 operands, f32 accumulate).
    out = jnp.dot(h.astype(jnp.bfloat16), w2_ref[...],
                  preferred_element_type=jnp.float32)
    out_ref[...] = out + b2_ref[...]


# ---------------------------------------------------------------------------
# Wrapper
# ---------------------------------------------------------------------------
_FREQS_CACHE = {}


def _sinusoid_freqs(half, max_period):
    """Baked numpy constant: exp(-log(max_period) * arange(half)/half)."""
    key = (half, max_period)
    if key not in _FREQS_CACHE:
        _FREQS_CACHE[key] = np.exp(
            -math.log(max_period) * np.arange(half, dtype=np.float32) / half
        ).reshape(1, half).astype(np.float32)
    return _FREQS_CACHE[key]


def timestep_embedder(t, params, frequency_embedding_size=256,
                      max_period=10000):
    """Pallas forward of TimestepEmbedder.

    t: (N,) float timesteps (may be fractional).
    params: dict with w1 (F, H), b1 (H,), w2 (H, H), b2 (H,), stored (in, out)
            so the math is x @ w1 (equivalent to PyTorch's x @ W.T).
    Returns (N, H) float32 embeddings.
    """
    assert frequency_embedding_size % 2 == 0, "odd freq dim not supported"
    # TODO(synk): odd `dim` zero-padding branch of the reference is omitted
    # since frequency_embedding_size=256 is even.

    n = int(t.shape[0])
    half = frequency_embedding_size // 2
    hidden = int(params["w1"].shape[1])

    # --- row tiling over N (pipelined; parallel across TCs on v7x) ---------
    tile_n = min(128, _round_up(n, 8))
    n_pad = _round_up(n, tile_n)
    grid = (n_pad // tile_n,)

    # --- lane-dense hidden padding -----------------------------------------
    h_pad = _round_up(hidden, 128)
    dh = h_pad - hidden

    # --- prepare operands ---------------------------------------------------
    t2d = t.astype(jnp.float32).reshape(n, 1)
    if n_pad != n:
        t2d = jnp.pad(t2d, ((0, n_pad - n), (0, 0)))

    freqs2d = jnp.asarray(_sinusoid_freqs(half, max_period))     # (1, half)

    w1 = params["w1"].astype(jnp.bfloat16)                        # (F, H)
    w1c = jnp.pad(w1[:half], ((0, 0), (0, dh)))                   # (half, H_pad)
    w1s = jnp.pad(w1[half:], ((0, 0), (0, dh)))                   # (half, H_pad)
    w2 = jnp.pad(params["w2"].astype(jnp.bfloat16),
                 ((0, dh), (0, dh)))                              # (H_pad, H_pad)
    b1 = jnp.pad(params["b1"].astype(jnp.float32), (0, dh)).reshape(1, h_pad)
    b2 = jnp.pad(params["b2"].astype(jnp.float32), (0, dh)).reshape(1, h_pad)

    # --- VMEM budget (weights resident + double-buffered row tiles) --------
    est = (tile_n * 1 * 4                 # t tile
           + half * 4                     # freqs
           + 2 * half * h_pad * 2         # w1 cos/sin (bf16)
           + h_pad * h_pad * 2            # w2 (bf16)
           + 2 * h_pad * 4                # biases
           + tile_n * h_pad * 4)          # out tile
    vmem_limit = int(min(max(2 * est + (4 << 20), 32 << 20), 96 << 20))

    resident = lambda i: (0, 0)           # weights/biases: same block each step

    out = pl.pallas_call(
        _timestep_embedder_kernel,
        out_shape=jax.ShapeDtypeStruct((n_pad, h_pad), jnp.float32),
        grid=grid,
        in_specs=[
            pl.BlockSpec((tile_n, 1), lambda i: (i, 0)),      # t
            pl.BlockSpec((1, half), resident),                # freqs
            pl.BlockSpec((half, h_pad), resident),            # w1_cos
            pl.BlockSpec((half, h_pad), resident),            # w1_sin
            pl.BlockSpec((1, h_pad), resident),               # b1
            pl.BlockSpec((h_pad, h_pad), resident),           # w2
            pl.BlockSpec((1, h_pad), resident),               # b2
        ],
        out_specs=pl.BlockSpec((tile_n, h_pad), lambda i: (i, 0)),
        compiler_params=pltpu.CompilerParams(
            dimension_semantics=("parallel",),
            vmem_limit_bytes=vmem_limit),
    )(t2d, freqs2d, w1c, w1s, b1, w2, b2)

    return out[:n, :hidden]


# ---------------------------------------------------------------------------
# Pure-JAX reference (f32 weights) for sanity checking
# ---------------------------------------------------------------------------
def _reference(t, params, frequency_embedding_size=256, max_period=10000):
    half = frequency_embedding_size // 2
    freqs = jnp.exp(
        -math.log(max_period)
        * jnp.arange(0, half, dtype=jnp.float32) / half)
    args = t.astype(jnp.float32)[:, None] * freqs[None]
    emb = jnp.concatenate([jnp.cos(args), jnp.sin(args)], axis=-1)
    h = emb @ params["w1"] + params["b1"]
    h = h * jax.nn.sigmoid(h)
    return h @ params["w2"] + params["b2"]


def init_params(key, hidden_size, frequency_embedding_size=256):
    k1, k2, k3, k4 = jax.random.split(key, 4)
    f, h = frequency_embedding_size, hidden_size
    w1 = jax.random.uniform(k1, (f, h), jnp.float32, -1.0, 1.0) / math.sqrt(f)
    b1 = jax.random.uniform(k2, (h,), jnp.float32, -1.0, 1.0) / math.sqrt(f)
    w2 = jax.random.uniform(k3, (h, h), jnp.float32, -1.0, 1.0) / math.sqrt(h)
    b2 = jax.random.uniform(k4, (h,), jnp.float32, -1.0, 1.0) / math.sqrt(h)
    return {"w1": w1, "b1": b1, "w2": w2, "b2": b2}


if __name__ == "__main__":
    hidden_size = 32
    freq_dim = 256
    batch = 8

    key = jax.random.PRNGKey(0)
    kp, kt = jax.random.split(key)
    params = init_params(kp, hidden_size, freq_dim)
    t = jax.random.uniform(kt, (batch,), jnp.float32, 0.0, 1000.0)

    out = timestep_embedder(t, params, freq_dim)
    out = jax.block_until_ready(out)

    ref = _reference(t, params, freq_dim)
    assert out.shape == (batch, hidden_size)
    # bf16 weights inside the kernel -> looser tolerance vs the f32 reference.
    assert jnp.allclose(out, ref, atol=2e-2, rtol=2e-2), "mismatch vs reference"

    print("KERNEL_OK")
</pallas_src>

<mosaic_0001>
module attributes {stable_mosaic.version = 11 : i64} {
  func.func @_timestep_embedder_kernel(%arg0: i32, %arg1: memref<8x1xf32, #tpu.memory_space<vmem>>, %arg2: memref<1x128xf32, #tpu.memory_space<vmem>>, %arg3: memref<128x128xbf16, #tpu.memory_space<vmem>>, %arg4: memref<128x128xbf16, #tpu.memory_space<vmem>>, %arg5: memref<1x128xf32, #tpu.memory_space<vmem>>, %arg6: memref<128x128xbf16, #tpu.memory_space<vmem>>, %arg7: memref<1x128xf32, #tpu.memory_space<vmem>>, %arg8: memref<8x128xf32, #tpu.memory_space<vmem>>) attributes {dimension_semantics = [#tpu.dimension_semantics<parallel>], iteration_bounds = array<i64: 1>, scalar_prefetch = 0 : i64, scratch_operands = 0 : i64, tpu.core_type = #tpu.core_type<tc>, window_params = [{transform_indices = @transform_0, window_bounds = array<i64: 8, 1>}, {pipeline_mode = #tpu.pipeline_mode<synchronous>, transform_indices = @transform_1, window_bounds = array<i64: 1, 128>}, {pipeline_mode = #tpu.pipeline_mode<synchronous>, transform_indices = @transform_2, window_bounds = array<i64: 128, 128>}, {pipeline_mode = #tpu.pipeline_mode<synchronous>, transform_indices = @transform_3, window_bounds = array<i64: 128, 128>}, {pipeline_mode = #tpu.pipeline_mode<synchronous>, transform_indices = @transform_4, window_bounds = array<i64: 1, 128>}, {pipeline_mode = #tpu.pipeline_mode<synchronous>, transform_indices = @transform_5, window_bounds = array<i64: 128, 128>}, {pipeline_mode = #tpu.pipeline_mode<synchronous>, transform_indices = @transform_6, window_bounds = array<i64: 1, 128>}, {transform_indices = @transform_7, window_bounds = array<i64: 8, 128>}]} {
    %c0 = arith.constant 0 : index
    %c0_0 = arith.constant 0 : index
    %0 = vector.load %arg1[%c0, %c0_0] : memref<8x1xf32, #tpu.memory_space<vmem>>, vector<8x1xf32>
    %c0_1 = arith.constant 0 : index
    %c0_2 = arith.constant 0 : index
    %1 = vector.load %arg2[%c0_1, %c0_2] : memref<1x128xf32, #tpu.memory_space<vmem>>, vector<1x128xf32>
    %2 = vector.broadcast %0 : vector<8x1xf32> to vector<8x128xf32>
    %3 = vector.broadcast %1 : vector<1x128xf32> to vector<8x128xf32>
    %4 = arith.mulf %2, %3 : vector<8x128xf32>
    %5 = math.cos %4 : vector<8x128xf32>
    %6 = arith.truncf %5 : vector<8x128xf32> to vector<8x128xbf16>
    %7 = math.sin %4 : vector<8x128xf32>
    %8 = arith.truncf %7 : vector<8x128xf32> to vector<8x128xbf16>
    %c0_3 = arith.constant 0 : index
    %c0_4 = arith.constant 0 : index
    %9 = vector.load %arg3[%c0_3, %c0_4] : memref<128x128xbf16, #tpu.memory_space<vmem>>, vector<128x128xbf16>
    %cst = arith.constant dense<0.000000e+00> : vector<8x128xf32>
    %10 = tpu.matmul %6, %9, %cst {dimension_numbers = #tpu.dot_dimension_numbers<[1], [0], [0], [1], [0, 0, 1, 1], [], []>} : vector<8x128xbf16>, vector<128x128xbf16>, vector<8x128xf32> -> vector<8x128xf32>
    %c0_5 = arith.constant 0 : index
    %c0_6 = arith.constant 0 : index
    %11 = vector.load %arg4[%c0_5, %c0_6] : memref<128x128xbf16, #tpu.memory_space<vmem>>, vector<128x128xbf16>
    %cst_7 = arith.constant dense<0.000000e+00> : vector<8x128xf32>
    %12 = tpu.matmul %8, %11, %cst_7 {dimension_numbers = #tpu.dot_dimension_numbers<[1], [0], [0], [1], [0, 0, 1, 1], [], []>} : vector<8x128xbf16>, vector<128x128xbf16>, vector<8x128xf32> -> vector<8x128xf32>
    %13 = arith.addf %10, %12 : vector<8x128xf32>
    %c0_8 = arith.constant 0 : index
    %c0_9 = arith.constant 0 : index
    %14 = vector.load %arg5[%c0_8, %c0_9] : memref<1x128xf32, #tpu.memory_space<vmem>>, vector<1x128xf32>
    %15 = vector.broadcast %14 : vector<1x128xf32> to vector<8x128xf32>
    %16 = arith.addf %13, %15 : vector<8x128xf32>
    %17 = arith.negf %16 : vector<8x128xf32>
    %18 = math.exp %17 : vector<8x128xf32>
    %cst_10 = arith.constant 1.000000e+00 : f32
    %19 = vector.broadcast %cst_10 : f32 to vector<8x128xf32>
    %20 = arith.addf %19, %18 : vector<8x128xf32>
    %21 = arith.divf %19, %20 : vector<8x128xf32>
    %22 = arith.mulf %16, %21 : vector<8x128xf32>
    %23 = arith.truncf %22 : vector<8x128xf32> to vector<8x128xbf16>
    %c0_11 = arith.constant 0 : index
    %c0_12 = arith.constant 0 : index
    %24 = vector.load %arg6[%c0_11, %c0_12] : memref<128x128xbf16, #tpu.memory_space<vmem>>, vector<128x128xbf16>
    %cst_13 = arith.constant dense<0.000000e+00> : vector<8x128xf32>
    %25 = tpu.matmul %23, %24, %cst_13 {dimension_numbers = #tpu.dot_dimension_numbers<[1], [0], [0], [1], [0, 0, 1, 1], [], []>} : vector<8x128xbf16>, vector<128x128xbf16>, vector<8x128xf32> -> vector<8x128xf32>
    %c0_14 = arith.constant 0 : index
    %c0_15 = arith.constant 0 : index
    %26 = vector.load %arg7[%c0_14, %c0_15] : memref<1x128xf32, #tpu.memory_space<vmem>>, vector<1x128xf32>
    %27 = vector.broadcast %26 : vector<1x128xf32> to vector<8x128xf32>
    %28 = arith.addf %25, %27 : vector<8x128xf32>
    %c0_16 = arith.constant 0 : index
    %c0_17 = arith.constant 0 : index
    %29 = vector.load %arg8[%c0_16, %c0_17] : memref<8x128xf32, #tpu.memory_space<vmem>>, vector<8x128xf32>
    tpu.vector_store %arg8[%c0_16, %c0_17], %28 {strides = array<i32>} : memref<8x128xf32, #tpu.memory_space<vmem>>, vector<8x128xf32>,
    return
  }
  func.func @transform_0(%arg0: i32) -> (i32, i32) {
    %c0_i32 = arith.constant 0 : i32
    %c0_i32_0 = arith.constant 0 : i32
    return %arg0, %c0_i32 : i32, i32
  }
  func.func @transform_1(%arg0: i32) -> (i32, i32) {
    %c0_i32 = arith.constant 0 : i32
    %c0_i32_0 = arith.constant 0 : i32
    %c0_i32_1 = arith.constant 0 : i32
    return %c0_i32, %c0_i32_0 : i32, i32
  }
  func.func @transform_2(%arg0: i32) -> (i32, i32) {
    %c0_i32 = arith.constant 0 : i32
    %c0_i32_0 = arith.constant 0 : i32
    %c0_i32_1 = arith.constant 0 : i32
    return %c0_i32, %c0_i32_0 : i32, i32
  }
  func.func @transform_3(%arg0: i32) -> (i32, i32) {
    %c0_i32 = arith.constant 0 : i32
    %c0_i32_0 = arith.constant 0 : i32
    %c0_i32_1 = arith.constant 0 : i32
    return %c0_i32, %c0_i32_0 : i32, i32
  }
  func.func @transform_4(%arg0: i32) -> (i32, i32) {
    %c0_i32 = arith.constant 0 : i32
    %c0_i32_0 = arith.constant 0 : i32
    %c0_i32_1 = arith.constant 0 : i32
    return %c0_i32, %c0_i32_0 : i32, i32
  }
  func.func @transform_5(%arg0: i32) -> (i32, i32) {
    %c0_i32 = arith.constant 0 : i32
    %c0_i32_0 = arith.constant 0 : i32
    %c0_i32_1 = arith.constant 0 : i32
    return %c0_i32, %c0_i32_0 : i32, i32
  }
  func.func @transform_6(%arg0: i32) -> (i32, i32) {
    %c0_i32 = arith.constant 0 : i32
    %c0_i32_0 = arith.constant 0 : i32
    %c0_i32_1 = arith.constant 0 : i32
    return %c0_i32, %c0_i32_0 : i32, i32
  }
  func.func @transform_7(%arg0: i32) -> (i32, i32) {
    %c0_i32 = arith.constant 0 : i32
    %c0_i32_0 = arith.constant 0 : i32
    return %arg0, %c0_i32 : i32, i32
  }
}

</mosaic_0001>

<llo_original>
// kernel: tpu_custom_call.1
$region0: #{tpu_custom_call.1}
  #allocation0 [shape = 'u32[]', space=smem, size = 0x4, offset = 0x4, fixed_abs, tag = 'smem constant byte address 0x4 - core index']
  #allocation1 [shape = 'u32[72,128]{1,0:T(1,128)}', space=vmem, size = 0x9000, scoped, tag = 'internal scratch']
  %s0 = inlined_call_operand.vmem [shape: f32[8,1], index: 0, kind: input, shape index: {}]
  %s1 = inlined_call_operand.vmem [shape: f32[1,128], index: 1, kind: input, shape index: {}]
  %s2 = inlined_call_operand.hbm [shape: bf16[128,128], index: 2, kind: input, shape index: {}]
  %s3 = inlined_call_operand.hbm [shape: bf16[128,128], index: 3, kind: input, shape index: {}]
  %s4 = inlined_call_operand.vmem [shape: f32[1,128], index: 4, kind: input, shape index: {}]
  %s5 = inlined_call_operand.hbm [shape: bf16[128,128], index: 5, kind: input, shape index: {}]
  %s6 = inlined_call_operand.vmem [shape: f32[1,128], index: 6, kind: input, shape index: {}]
  %s7 = inlined_call_operand.hbm [shape: f32[8,128], index: 7, kind: output, shape index: {}]
  %s8 = sld [smem:[#allocation0]]
  $region50: #{tpu_custom_call.1} parent=0
    _
  %s10 = ssub.s32 1, %s8
  %s11 = scalar_select 0, %s10, %s8
  $region1: #{tpu_custom_call.1} parent=0
    #allocation2 [shape = 'u8[32768]{0}', space=vmem, size = 0x8000, scoped, tag = 'input window, operand 2, single buffered']
    #allocation3 [shape = 's32[1]{0}', space=sflag, size = 0x4, scoped, tag = 'scoped memory for tpu_custom_call.1']
    #allocation4 [shape = 's32[1]{0}', space=sflag, size = 0x4, scoped, tag = 'scoped memory for tpu_custom_call.1']
    #allocation5 [shape = 'u8[32768]{0}', space=vmem, size = 0x8000, scoped, tag = 'input window, operand 3, single buffered']
    #allocation6 [shape = 's32[1]{0}', space=sflag, size = 0x4, scoped, tag = 'scoped memory for tpu_custom_call.1']
    #allocation7 [shape = 'u8[32768]{0}', space=vmem, size = 0x8000, scoped, tag = 'input window, operand 5, single buffered']
    #allocation8 [shape = 'u8[4096]{0}', space=vmem, size = 0x1000, scoped, tag = 'output window, operand 0, single buffered']
    %12 = vsyncpa [#allocation3], 0
    %13 = vsyncpa [#allocation6], 0
    %14 = vsyncpa [#allocation4], 0
    // Predicated region
    $region2: #{tpu_custom_call.1} parent=1 // pred_check
      _
    $region3: #{tpu_custom_call.1} parent=1 // pred_check_branch
      %16 = sbr.rel (0) target = $region5
    $region4: #{tpu_custom_call.1} parent=1 // pred_region
      _
    $region5: #{tpu_custom_call.1} parent=1 // pred_fallthru
      _
    // Predicated region
    $region6: #{tpu_custom_call.1} parent=1 // pred_check
      _
    $region7: #{tpu_custom_call.1} parent=1 // pred_check_branch
      %18 = sbr.rel (0) target = $region9
    $region8: #{tpu_custom_call.1} parent=1 // pred_region
      _
    $region9: #{tpu_custom_call.1} parent=1 // pred_fallthru
      _
    // Predicated region
    $region10: #{tpu_custom_call.1} parent=1 // pred_check
      _
    $region11: #{tpu_custom_call.1} parent=1 // pred_check_branch
      %20 = sbr.rel (0) target = $region13
    $region12: #{tpu_custom_call.1} parent=1 // pred_region
      %22 = vsyncadd [#allocation3], 0
      %s23 = sshll.u32 %s2, 4
      %s24 = int_to_ptr.hbm [resolvable:$true] %s23
      %s25 = sshll.u32 [#allocation2], 4
      %s26 = int_to_ptr.vmem [resolvable:$true] %s25
      %31 = dma.hbm_to_vmem [thread:$0]  %s24, 1024, %s26, [#allocation3], 64, 64, 4
    $region13: #{tpu_custom_call.1} parent=1 // pred_fallthru
      _
    // Predicated region
    $region14: #{tpu_custom_call.1} parent=1 // pred_check
      _
    $region15: #{tpu_custom_call.1} parent=1 // pred_check_branch
      %33 = sbr.rel (0) target = $region17
    $region16: #{tpu_custom_call.1} parent=1 // pred_region
      %35 = vsyncadd [#allocation6], 0
      %s36 = sshll.u32 %s3, 4
      %s37 = int_to_ptr.hbm [resolvable:$true] %s36
      %s38 = sshll.u32 [#allocation5], 4
      %s39 = int_to_ptr.vmem [resolvable:$true] %s38
      %44 = dma.hbm_to_vmem [thread:$0]  %s37, 1024, %s39, [#allocation6], 64, 64, 4
    $region17: #{tpu_custom_call.1} parent=1 // pred_fallthru
      _
    // Predicated region
    $region18: #{tpu_custom_call.1} parent=1 // pred_check
      _
    $region19: #{tpu_custom_call.1} parent=1 // pred_check_branch
      %46 = sbr.rel (0) target = $region21
    $region20: #{tpu_custom_call.1} parent=1 // pred_region
      _
    $region21: #{tpu_custom_call.1} parent=1 // pred_fallthru
      _
    // Predicated region
    $region22: #{tpu_custom_call.1} parent=1 // pred_check
      _
    $region23: #{tpu_custom_call.1} parent=1 // pred_check_branch
      %48 = sbr.rel (0) target = $region25
    $region24: #{tpu_custom_call.1} parent=1 // pred_region
      %50 = vsyncadd [#allocation6], 0
      %s51 = sshll.u32 %s5, 4
      %s52 = int_to_ptr.hbm [resolvable:$true] %s51
      %s53 = sshll.u32 [#allocation7], 4
      %s54 = int_to_ptr.vmem [resolvable:$true] %s53
      %59 = dma.hbm_to_vmem [thread:$0]  %s52, 1024, %s54, [#allocation6], 64, 64, 4
    $region25: #{tpu_custom_call.1} parent=1 // pred_fallthru
      _
    // Predicated region
    $region26: #{tpu_custom_call.1} parent=1 // pred_check
      _
    $region27: #{tpu_custom_call.1} parent=1 // pred_check_branch
      %61 = sbr.rel (0) target = $region29
    $region28: #{tpu_custom_call.1} parent=1 // pred_region
      _
    $region29: #{tpu_custom_call.1} parent=1 // pred_fallthru
      _
    // Predicated region
    $region30: #{tpu_custom_call.1} parent=1 // pred_check
      _
    $region31: #{tpu_custom_call.1} parent=1 // pred_check_branch
      %63 = sbr.rel (0) target = $region33
    $region32: #{tpu_custom_call.1} parent=1 // pred_region
      %65 = dma.done [#allocation3], 1024
    $region33: #{tpu_custom_call.1} parent=1 // pred_fallthru
      _
    // Predicated region
    $region34: #{tpu_custom_call.1} parent=1 // pred_check
      _
    $region35: #{tpu_custom_call.1} parent=1 // pred_check_branch
      %67 = sbr.rel (0) target = $region37
    $region36: #{tpu_custom_call.1} parent=1 // pred_region
      %69 = dma.done [#allocation6], 1024
    $region37: #{tpu_custom_call.1} parent=1 // pred_fallthru
      _
    // Predicated region
    $region38: #{tpu_custom_call.1} parent=1 // pred_check
      _
    $region39: #{tpu_custom_call.1} parent=1 // pred_check_branch
      %71 = sbr.rel (0) target = $region41
    $region40: #{tpu_custom_call.1} parent=1 // pred_region
      %73 = dma.done [#allocation6], 1024
    $region41: #{tpu_custom_call.1} parent=1 // pred_fallthru
      _
    %v74 = vld [vmem:[%s0] sm:$0xff]
    %v75 = vld [vmem:[%s1] sm:$0x1]
    %77 = vset.pattern.permute.xlu0 0
    %78 = vperm.xlu0 %77, %v74
    %v79 = vpop.permute.xlu0 %78
    %v82 = vperm.slane %v75, 0
    %v84 = vmul.f32 %v79, %v82
    %v85 = vand.u32 2147483647, %v84
    %vm86 = vcmp.le.f32.partialorder %v85, 0.7853982
    %vm87 = vcmp.lt.s32.totalorder %v84, 0
    %v88 = vand.u32 %v84, 2139095040
    %v89 = vshrl.u32 %v88, 23
    %v90 = vsub.s32 %v89, 127
    %v91 = vand.u32 2147483647, %v84
    %v92 = vand.u32 %v91, 8388607
    %v93 = vor.u32 %v92, 8388608
    %v94 = vsub.s32 0, %v93
    %v95 = vadd.s32 %v90, 1
    %vm96 = vcmp.gt.s32.totalorder %v95, 0
    %v97 = vsel %vm96, %v95, 0
    %v98 = vshrl.u32 %v97, 5
    %v99 = vand.u32 %v97, 31
    %v100 = vsub.s32 32, %v99
    %v101 = vshrl.u32 683565275, %v100
    %v102 = vshll.u32 683565275, %v99
    %v103 = vshrl.u32 2475754826, %v100
    %v104 = vor.u32 %v102, %v103
    %v105 = vshll.u32 2475754826, %v99
    %v106 = vshrl.u32 2131351028, %v100
    %v107 = vor.u32 %v105, %v106
    %v108 = vshll.u32 2131351028, %v99
    %v109 = vshrl.u32 2102212464, %v100
    %v110 = vor.u32 %v108, %v109
    %v111 = vshll.u32 2102212464, %v99
    %v112 = vshrl.u32 920167782, %v100
    %v113 = vor.u32 %v111, %v112
    %v114 = vshll.u32 920167782, %v99
    %v115 = vshrl.u32 1326507024, %v100
    %v116 = vor.u32 %v114, %v115
    %vm117 = vcmp.lt.s32.totalorder %v98, 1
    %vm118 = vcmp.lt.s32.totalorder %v98, 2
    %vm119 = vcmp.lt.s32.totalorder %v98, 3
    %vm120 = vcmp.lt.s32.totalorder %v98, 4
    %v121 = vsel %vm117, %v101, %v104
    %v122 = vsel %vm120, %v110, 2102212464
    %v123 = vsel %vm119, %v107, %v122
    %v124 = vsel %vm118, %v121, %v123
    %v125 = vsel %vm117, %v104, %v107
    %v126 = vsel %vm120, %v113, 920167782
    %v127 = vsel %vm119, %v110, %v126
    %v128 = vsel %vm118, %v125, %v127
    %v129 = vsel %vm117, %v107, %v110
    %v130 = vsel %vm120, %v116, 1326507024
    %v131 = vsel %vm119, %v113, %v130
    %v132 = vsel %vm118, %v129, %v131
    %v133 = vshll.u32 %v93, 8
    %v134 = vand.u32 %v133, 65535
    %v135 = vshrl.u32 %v133, 16
    %v136 = vand.u32 %v132, 65535
    %v137 = vshrl.u32 %v132, 16
    %v138 = vmul.u32 %v134, %v136
    %v139 = vmul.u32 %v134, %v137
    %v140 = vmul.u32 %v135, %v136
    %v141 = vmul.u32 %v135, %v137
    %v142 = vshll.u32 %v139, 16
    %v143 = vshrl.u32 %v139, 16
    %v144 = vshll.u32 %v140, 16
    %v145 = vshrl.u32 %v140, 16
    %vm146 = vc.u32 %v138, %v142
    %v147 = vsel %vm146, 1, 0
    %v148 = vadd.s32 %v138, %v142
    %v149 = vadd.s32 %v141, %v147
    %vm150 = vc.u32 %v148, %v144
    %v151 = vsel %vm150, 1, 0
    %v152 = vadd.s32 %v148, %v144
    %v153 = vadd.s32 %v149, %v151
    %v154 = vadd.s32 %v153, %v143
    %v155 = vadd.s32 %v154, %v145
    %v156 = vand.u32 %v133, 65535
    %v157 = vshrl.u32 %v133, 16
    %v158 = vand.u32 %v128, 65535
    %v159 = vshrl.u32 %v128, 16
    %v160 = vmul.u32 %v156, %v158
    %v161 = vmul.u32 %v156, %v159
    %v162 = vmul.u32 %v157, %v158
    %v163 = vmul.u32 %v157, %v159
    %v164 = vshll.u32 %v161, 16
    %v165 = vshrl.u32 %v161, 16
    %v166 = vshll.u32 %v162, 16
    %v167 = vshrl.u32 %v162, 16
    %vm168 = vc.u32 %v160, %v164
    %v169 = vsel %vm168, 1, 0
    %v170 = vadd.s32 %v160, %v164
    %v171 = vadd.s32 %v163, %v169
    %vm172 = vc.u32 %v170, %v166
    %v173 = vsel %vm172, 1, 0
    %v174 = vadd.s32 %v170, %v166
    %v175 = vadd.s32 %v171, %v173
    %v176 = vadd.s32 %v175, %v165
    %v177 = vadd.s32 %v176, %v167
    %v178 = vmul.u32 %v133, %v124
    %v179 = vadd.s32 %v155, %v174
    %vm180 = vc.u32 %v155, %v174
    %v181 = vadd.s32 %v177, 1
    %v182 = vsel %vm180, %v181, %v177
    %v183 = vadd.s32 %v178, %v182
    %v184 = vadd.s32 %v183, 536870912
    %v185 = vshrl.u32 %v184, 30
    %v186 = vshll.u32 %v185, 30
    %v187 = vsub.s32 %v183, %v186
    %vm188 = vcmp.lt.s32.totalorder %v187, 0
    %v189 = vsub.s32 0, %v187
    %v190 = vsel %vm188, %v189, %v187
    %v191 = vclz %v190
    %v192 = vsub.s32 %v191, 2
    %vm193 = vcmp.gt.s32.totalorder 0, %v192
    %v194 = vsel %vm193, 0, %v192
    %v195 = vsub.s32 32, %v194
    %v196 = vshll.u32 %v187, %v194
    %v197 = vshrl.u32 %v179, %v195
    %v198 = vor.u32 %v196, %v197
    %v199 = vsub.s32 4294967266, %v194
    %v200 = vadd.s32 %v199, 127
    %v201 = vshll.u32 %v200, 23
    %v202 = vor.u32 4788187, %v201
    %v203 = vand.u32 2147483647, %v202
    %v205 = vcvt.s32.f32 %v198
    %v206 = vmul.f32 %v205, %v203
    %v207 = vxor.u32 %v206, 2147483648
    %v208 = vsel %vm87, %v207, %v206
    %v209 = vsub.s32 4, %v185
    %v210 = vsel %vm87, %v209, %v185
    %v211 = vsel %vm86, %v84, %v208
    %v212 = vsel %vm86, 0, %v210
    %v213 = vmul.f32 %v211, %v211
    %v214 = vmul.f32 %v213, -0.001358992
    %v215 = vadd.f32 %v214, 0.041655596
    %v216 = vmul.f32 %v213, %v215
    %v217 = vadd.f32 %v216, -0.4999988
    %v218 = vmul.f32 %v213, %v217
    %v219 = vadd.f32 1.0, %v218
    %v220 = vmul.f32 %v211, %v211
    %v221 = vmul.f32 %v220, -0.00019511016
    %v222 = vadd.f32 %v221, 0.008332121
    %v223 = vmul.f32 %v220, %v222
    %v224 = vadd.f32 %v223, -0.16666654
    %v225 = vmul.f32 %v220, %v224
    %v226 = vadd.f32 %v225, 1.0
    %v227 = vmul.f32 %v226, %v211
    %vm228 = vweird.f32 %v84
    %v229 = vand.u32 %v212, 3
    %vm230 = vcmp.lt.s32.totalorder %v229, 2
    %vm231 = vcmp.eq.s32.totalorder %v229, 0
    %v232 = vxor.u32 %v227, 2147483648
    %v233 = vsel %vm231, %v219, %v232
    %vm234 = vcmp.eq.s32.totalorder %v229, 2
    %v235 = vxor.u32 %v219, 2147483648
    %v236 = vsel %vm234, %v235, %v227
    %v237 = vsel %vm230, %v233, %v236
    %v238 = vsel %vm228, nan, %v237
    %v239 = vpack.c.bf16 %v238, %v238
    %v240 = vand.u32 2147483647, %v84
    %vm241 = vcmp.le.f32.partialorder %v240, 0.7853982
    %vm242 = vcmp.lt.s32.totalorder %v84, 0
    %v243 = vand.u32 %v84, 2139095040
    %v244 = vshrl.u32 %v243, 23
    %v245 = vsub.s32 %v244, 127
    %v246 = vand.u32 2147483647, %v84
    %v247 = vand.u32 %v246, 8388607
    %v248 = vor.u32 %v247, 8388608
    %v249 = vsub.s32 0, %v248
    %v250 = vadd.s32 %v245, 1
    %vm251 = vcmp.gt.s32.totalorder %v250, 0
    %v252 = vsel %vm251, %v250, 0
    %v253 = vshrl.u32 %v252, 5
    %v254 = vand.u32 %v252, 31
    %v255 = vsub.s32 32, %v254
    %v256 = vshrl.u32 683565275, %v255
    %v257 = vshll.u32 683565275, %v254
    %v258 = vshrl.u32 2475754826, %v255
    %v259 = vor.u32 %v257, %v258
    %v260 = vshll.u32 2475754826, %v254
    %v261 = vshrl.u32 2131351028, %v255
    %v262 = vor.u32 %v260, %v261
    %v263 = vshll.u32 2131351028, %v254
    %v264 = vshrl.u32 2102212464, %v255
    %v265 = vor.u32 %v263, %v264
    %v266 = vshll.u32 2102212464, %v254
    %v267 = vshrl.u32 920167782, %v255
    %v268 = vor.u32 %v266, %v267
    %v269 = vshll.u32 920167782, %v254
    %v270 = vshrl.u32 1326507024, %v255
    %v271 = vor.u32 %v269, %v270
    %vm272 = vcmp.lt.s32.totalorder %v253, 1
    %vm273 = vcmp.lt.s32.totalorder %v253, 2
    %vm274 = vcmp.lt.s32.totalorder %v253, 3
    %vm275 = vcmp.lt.s32.totalorder %v253, 4
    %v276 = vsel %vm272, %v256, %v259
    %v277 = vsel %vm275, %v265, 2102212464
    %v278 = vsel %vm274, %v262, %v277
    %v279 = vsel %vm273, %v276, %v278
    %v280 = vsel %vm272, %v259, %v262
    %v281 = vsel %vm275, %v268, 920167782
    %v282 = vsel %vm274, %v265, %v281
    %v283 = vsel %vm273, %v280, %v282
    %v284 = vsel %vm272, %v262, %v265
    %v285 = vsel %vm275, %v271, 1326507024
    %v286 = vsel %vm274, %v268, %v285
    %v287 = vsel %vm273, %v284, %v286
    %v288 = vshll.u32 %v248, 8
    %v289 = vand.u32 %v288, 65535
    %v290 = vshrl.u32 %v288, 16
    %v291 = vand.u32 %v287, 65535
    %v292 = vshrl.u32 %v287, 16
    %v293 = vmul.u32 %v289, %v291
    %v294 = vmul.u32 %v289, %v292
    %v295 = vmul.u32 %v290, %v291
    %v296 = vmul.u32 %v290, %v292
    %v297 = vshll.u32 %v294, 16
    %v298 = vshrl.u32 %v294, 16
    %v299 = vshll.u32 %v295, 16
    %v300 = vshrl.u32 %v295, 16
    %vm301 = vc.u32 %v293, %v297
    %v302 = vsel %vm301, 1, 0
    %v303 = vadd.s32 %v293, %v297
    %v304 = vadd.s32 %v296, %v302
    %vm305 = vc.u32 %v303, %v299
    %v306 = vsel %vm305, 1, 0
    %v307 = vadd.s32 %v303, %v299
    %v308 = vadd.s32 %v304, %v306
    %v309 = vadd.s32 %v308, %v298
    %v310 = vadd.s32 %v309, %v300
    %v311 = vand.u32 %v288, 65535
    %v312 = vshrl.u32 %v288, 16
    %v313 = vand.u32 %v283, 65535
    %v314 = vshrl.u32 %v283, 16
    %v315 = vmul.u32 %v311, %v313
    %v316 = vmul.u32 %v311, %v314
    %v317 = vmul.u32 %v312, %v313
    %v318 = vmul.u32 %v312, %v314
    %v319 = vshll.u32 %v316, 16
    %v320 = vshrl.u32 %v316, 16
    %v321 = vshll.u32 %v317, 16
    %v322 = vshrl.u32 %v317, 16
    %vm323 = vc.u32 %v315, %v319
    %v324 = vsel %vm323, 1, 0
    %v325 = vadd.s32 %v315, %v319
    %v326 = vadd.s32 %v318, %v324
    %vm327 = vc.u32 %v325, %v321
    %v328 = vsel %vm327, 1, 0
    %v329 = vadd.s32 %v325, %v321
    %v330 = vadd.s32 %v326, %v328
    %v331 = vadd.s32 %v330, %v320
    %v332 = vadd.s32 %v331, %v322
    %v333 = vmul.u32 %v288, %v279
    %v334 = vadd.s32 %v310, %v329
    %vm335 = vc.u32 %v310, %v329
    %v336 = vadd.s32 %v332, 1
    %v337 = vsel %vm335, %v336, %v332
    %v338 = vadd.s32 %v333, %v337
    %v339 = vadd.s32 %v338, 536870912
    %v340 = vshrl.u32 %v339, 30
    %v341 = vshll.u32 %v340, 30
    %v342 = vsub.s32 %v338, %v341
    %vm343 = vcmp.lt.s32.totalorder %v342, 0
    %v344 = vsub.s32 0, %v342
    %v345 = vsel %vm343, %v344, %v342
    %v346 = vclz %v345
    %v347 = vsub.s32 %v346, 2
    %vm348 = vcmp.gt.s32.totalorder 0, %v347
    %v349 = vsel %vm348, 0, %v347
    %v350 = vsub.s32 32, %v349
    %v351 = vshll.u32 %v342, %v349
    %v352 = vshrl.u32 %v334, %v350
    %v353 = vor.u32 %v351, %v352
    %v354 = vsub.s32 4294967266, %v349
    %v355 = vadd.s32 %v354, 127
    %v356 = vshll.u32 %v355, 23
    %v357 = vor.u32 4788187, %v356
    %v358 = vand.u32 2147483647, %v357
    %v360 = vcvt.s32.f32 %v353
    %v361 = vmul.f32 %v360, %v358
    %v362 = vxor.u32 %v361, 2147483648
    %v363 = vsel %vm242, %v362, %v361
    %v364 = vsub.s32 4, %v340
    %v365 = vsel %vm242, %v364, %v340
    %v366 = vsel %vm241, %v84, %v363
    %v367 = vsel %vm241, 0, %v365
    %v368 = vmul.f32 %v366, %v366
    %v369 = vmul.f32 %v368, -0.001358992
    %v370 = vadd.f32 %v369, 0.041655596
    %v371 = vmul.f32 %v368, %v370
    %v372 = vadd.f32 %v371, -0.4999988
    %v373 = vmul.f32 %v368, %v372
    %v374 = vadd.f32 1.0, %v373
    %v375 = vmul.f32 %v366, %v366
    %v376 = vmul.f32 %v375, -0.00019511016
    %v377 = vadd.f32 %v376, 0.008332121
    %v378 = vmul.f32 %v375, %v377
    %v379 = vadd.f32 %v378, -0.16666654
    %v380 = vmul.f32 %v375, %v379
    %v381 = vadd.f32 %v380, 1.0
    %v382 = vmul.f32 %v381, %v366
    %vm383 = vweird.f32 %v84
    %v384 = vadd.s32 %v367, 3
    %v385 = vand.u32 %v384, 3
    %vm386 = vcmp.lt.s32.totalorder %v385, 2
    %vm387 = vcmp.eq.s32.totalorder %v385, 0
    %v388 = vxor.u32 %v382, 2147483648
    %v389 = vsel %vm387, %v374, %v388
    %vm390 = vcmp.eq.s32.totalorder %v385, 2
    %v391 = vxor.u32 %v374, 2147483648
    %v392 = vsel %vm390, %v391, %v382
    %v393 = vsel %vm386, %v389, %v392
    %v394 = vsel %vm383, nan, %v393
    %v395 = vpack.c.bf16 %v394, %v394
    %v396 = vld [vmem:[#allocation2] sm:$0xf]
    %v397 = vld [vmem:[#allocation2 + $0x4] sm:$0xf]
    %v398 = vld [vmem:[#allocation2 + $0x8] sm:$0xf]
    %v399 = vld [vmem:[#allocation2 + $0xc] sm:$0xf]
    %v400 = vld [vmem:[#allocation2 + $0x10] sm:$0xf]
    %v401 = vld [vmem:[#allocation2 + $0x14] sm:$0xf]
    %v402 = vld [vmem:[#allocation2 + $0x18] sm:$0xf]
    %v403 = vld [vmem:[#allocation2 + $0x1c] sm:$0xf]
    %v404 = vld [vmem:[#allocation2 + $0x20] sm:$0xf]
    %v405 = vld [vmem:[#allocation2 + $0x24] sm:$0xf]
    %v406 = vld [vmem:[#allocation2 + $0x28] sm:$0xf]
    %v407 = vld [vmem:[#allocation2 + $0x2c] sm:$0xf]
    %v408 = vld [vmem:[#allocation2 + $0x30] sm:$0xf]
    %v409 = vld [vmem:[#allocation2 + $0x34] sm:$0xf]
    %v410 = vld [vmem:[#allocation2 + $0x38] sm:$0xf]
    %v411 = vld [vmem:[#allocation2 + $0x3c] sm:$0xf]
    %v412 = vld [vmem:[#allocation5] sm:$0xf]
    %v413 = vld [vmem:[#allocation5 + $0x4] sm:$0xf]
    %v414 = vld [vmem:[#allocation5 + $0x8] sm:$0xf]
    %v415 = vld [vmem:[#allocation5 + $0xc] sm:$0xf]
    %v416 = vld [vmem:[#allocation5 + $0x10] sm:$0xf]
    %v417 = vld [vmem:[#allocation5 + $0x14] sm:$0xf]
    %v418 = vld [vmem:[#allocation5 + $0x18] sm:$0xf]
    %v419 = vld [vmem:[#allocation5 + $0x1c] sm:$0xf]
    %v420 = vld [vmem:[#allocation5 + $0x20] sm:$0xf]
    %v421 = vld [vmem:[#allocation5 + $0x24] sm:$0xf]
    %v422 = vld [vmem:[#allocation5 + $0x28] sm:$0xf]
    %v423 = vld [vmem:[#allocation5 + $0x2c] sm:$0xf]
    %v424 = vld [vmem:[#allocation5 + $0x30] sm:$0xf]
    %v425 = vld [vmem:[#allocation5 + $0x34] sm:$0xf]
    %v426 = vld [vmem:[#allocation5 + $0x38] sm:$0xf]
    %v427 = vld [vmem:[#allocation5 + $0x3c] sm:$0xf]
    %v444 = vunpack.c.l.b16 %v412
    %v445 = vunpack.c.l.b16 %v413
    %v446 = vunpack.c.l.b16 %v414
    %v447 = vunpack.c.l.b16 %v415
    %v448 = vunpack.c.l.b16 %v416
    %v449 = vunpack.c.l.b16 %v417
    %v450 = vunpack.c.l.b16 %v418
    %v451 = vunpack.c.l.b16 %v419
    %v452 = vunpack.c.l.b16 %v420
    %v453 = vunpack.c.l.b16 %v421
    %v454 = vunpack.c.l.b16 %v422
    %v455 = vunpack.c.l.b16 %v423
    %v456 = vunpack.c.l.b16 %v424
    %v457 = vunpack.c.l.b16 %v425
    %v458 = vunpack.c.l.b16 %v426
    %v459 = vunpack.c.l.b16 %v427
    %v460 = vpack.c.b16 %v445, %v444
    %v461 = vpack.c.b16 %v447, %v446
    %v462 = vpack.c.b16 %v449, %v448
    %v463 = vpack.c.b16 %v451, %v450
    %v464 = vpack.c.b16 %v453, %v452
    %v465 = vpack.c.b16 %v455, %v454
    %v466 = vpack.c.b16 %v457, %v456
    %v467 = vpack.c.b16 %v459, %v458
    %476 = vmatpush.bf16.msra.mxu0 %v467
    %477 = vmatpush.bf16.msra.mxu0 %v466
    %478 = vmatpush.bf16.msra.mxu0 %v465
    %479 = vmatpush.bf16.msra.mxu0 %v464
    %480 = vmatpush.bf16.msra.mxu0 %v463
    %481 = vmatpush.bf16.msra.mxu0 %v462
    %482 = vmatpush.bf16.msra.mxu0 %v461
    %483 = vmatpush.bf16.msra.mxu0 %v460
    %484 = vmatmul.bf16.gmra.mxu0 %v395
    %v485 = vpop.f32.mrf.mxu0
    %v486 = vadd.f32 0.0, %v485
    %v487 = vpop.f32.mrf.mxu0
    %488 = vdwg.mxu0
    %v505 = vunpack.c.l.b16 %v396
    %v506 = vunpack.c.l.b16 %v397
    %v507 = vunpack.c.l.b16 %v398
    %v508 = vunpack.c.l.b16 %v399
    %v509 = vunpack.c.l.b16 %v400
    %v510 = vunpack.c.l.b16 %v401
    %v511 = vunpack.c.l.b16 %v402
    %v512 = vunpack.c.l.b16 %v403
    %v513 = vunpack.c.l.b16 %v404
    %v514 = vunpack.c.l.b16 %v405
    %v515 = vunpack.c.l.b16 %v406
    %v516 = vunpack.c.l.b16 %v407
    %v517 = vunpack.c.l.b16 %v408
    %v518 = vunpack.c.l.b16 %v409
    %v519 = vunpack.c.l.b16 %v410
    %v520 = vunpack.c.l.b16 %v411
    %v521 = vpack.c.b16 %v506, %v505
    %v522 = vpack.c.b16 %v508, %v507
    %v523 = vpack.c.b16 %v510, %v509
    %v524 = vpack.c.b16 %v512, %v511
    %v525 = vpack.c.b16 %v514, %v513
    %v526 = vpack.c.b16 %v516, %v515
    %v527 = vpack.c.b16 %v518, %v517
    %v528 = vpack.c.b16 %v520, %v519
    %537 = vmatpush.bf16.msra.mxu0 %v528
    %538 = vmatpush.bf16.msra.mxu0 %v527
    %539 = vmatpush.bf16.msra.mxu0 %v526
    %540 = vmatpush.bf16.msra.mxu0 %v525
    %541 = vmatpush.bf16.msra.mxu0 %v524
    %542 = vmatpush.bf16.msra.mxu0 %v523
    %543 = vmatpush.bf16.msra.mxu0 %v522
    %544 = vmatpush.bf16.msra.mxu0 %v521
    %545 = vmatmul.bf16.gmra.mxu0 %v239
    %v546 = vpop.f32.mrf.mxu0
    %v547 = vadd.f32 %v486, %v546
    %v548 = vpop.f32.mrf.mxu0
    %549 = vdwg.mxu0
    %v550 = vld [vmem:[%s4] sm:$0x1]
    %v552 = vperm.slane %v550, 0
    %v554 = vadd.f32 %v547, %v552
    %v555 = vxor.u32 %v554, 2147483648
    %v556 = vmul.f32 %v555, 1.442695
    %v557 = vpow.pop %v556
    %v558 = vadd.f32 %v557, 1.0
    %v559 = vrcp.pop %v558
    %v560 = vmul.f32 %v558, %v559
    %v561 = vsub.f32 1.0, %v560
    %v562 = vmul.f32 %v559, %v561
    %v563 = vadd.f32 %v559, %v562
    %vm564 = vweird.f32 %v558
    %vm565 = vweird.f32 %v559
    %vm566 = vmor %vm564, %vm565
    %v567 = vsel %vm566, %v559, %v563
    %v568 = vand.u32 2147483647, %v558
    %vm569 = vcmp.eq.f32.partialorder %v568, 8.507059e+37
    %v570 = vand.u32 %v558, 2147483648
    %v571 = vor.u32 1.1754944e-38, %v570
    %v572 = vsel %vm569, %v571, %v567
    %v573 = vmul.f32 1.0, %v572
    %v574 = vmul.f32 %v554, %v573
    %v575 = vpack.c.bf16 %v574, %v574
    %v576 = vld [vmem:[#allocation7] sm:$0xf]
    %v577 = vld [vmem:[#allocation7 + $0x4] sm:$0xf]
    %v578 = vld [vmem:[#allocation7 + $0x8] sm:$0xf]
    %v579 = vld [vmem:[#allocation7 + $0xc] sm:$0xf]
    %v580 = vld [vmem:[#allocation7 + $0x10] sm:$0xf]
    %v581 = vld [vmem:[#allocation7 + $0x14] sm:$0xf]
    %v582 = vld [vmem:[#allocation7 + $0x18] sm:$0xf]
    %v583 = vld [vmem:[#allocation7 + $0x1c] sm:$0xf]
    %v584 = vld [vmem:[#allocation7 + $0x20] sm:$0xf]
    %v585 = vld [vmem:[#allocation7 + $0x24] sm:$0xf]
    %v586 = vld [vmem:[#allocation7 + $0x28] sm:$0xf]
    %v587 = vld [vmem:[#allocation7 + $0x2c] sm:$0xf]
    %v588 = vld [vmem:[#allocation7 + $0x30] sm:$0xf]
    %v589 = vld [vmem:[#allocation7 + $0x34] sm:$0xf]
    %v590 = vld [vmem:[#allocation7 + $0x38] sm:$0xf]
    %v591 = vld [vmem:[#allocation7 + $0x3c] sm:$0xf]
    %v592 = vld [vmem:[%s6] sm:$0x1]
    %v594 = vperm.slane %v592, 0
    %v612 = vunpack.c.l.b16 %v576
    %v613 = vunpack.c.l.b16 %v577
    %v614 = vunpack.c.l.b16 %v578
    %v615 = vunpack.c.l.b16 %v579
    %v616 = vunpack.c.l.b16 %v580
    %v617 = vunpack.c.l.b16 %v581
    %v618 = vunpack.c.l.b16 %v582
    %v619 = vunpack.c.l.b16 %v583
    %v620 = vunpack.c.l.b16 %v584
    %v621 = vunpack.c.l.b16 %v585
    %v622 = vunpack.c.l.b16 %v586
    %v623 = vunpack.c.l.b16 %v587
    %v624 = vunpack.c.l.b16 %v588
    %v625 = vunpack.c.l.b16 %v589
    %v626 = vunpack.c.l.b16 %v590
    %v627 = vunpack.c.l.b16 %v591
    %v628 = vpack.c.b16 %v613, %v612
    %v629 = vpack.c.b16 %v615, %v614
    %v630 = vpack.c.b16 %v617, %v616
    %v631 = vpack.c.b16 %v619, %v618
    %v632 = vpack.c.b16 %v621, %v620
    %v633 = vpack.c.b16 %v623, %v622
    %v634 = vpack.c.b16 %v625, %v624
    %v635 = vpack.c.b16 %v627, %v626
    %644 = vmatpush.bf16.msra.mxu0 %v635
    %645 = vmatpush.bf16.msra.mxu0 %v634
    %646 = vmatpush.bf16.msra.mxu0 %v633
    %647 = vmatpush.bf16.msra.mxu0 %v632
    %648 = vmatpush.bf16.msra.mxu0 %v631
    %649 = vmatpush.bf16.msra.mxu0 %v630
    %650 = vmatpush.bf16.msra.mxu0 %v629
    %651 = vmatpush.bf16.msra.mxu0 %v628
    %652 = vmatmul.bf16.gmra.mxu0 %v575
    %v653 = vpop.f32.mrf.mxu0
    %v654 = vadd.f32 %v594, %v653
    %v655 = vpop.f32.mrf.mxu0
    %656 = vdwg.mxu0
    %657 = vst [vmem:[#allocation8] sm:$0xff] %v654
    // Predicated region
    $region42: #{tpu_custom_call.1} parent=1 // pred_check
      _
    $region43: #{tpu_custom_call.1} parent=1 // pred_check_branch
      %659 = sbr.rel (0) target = $region45
    $region44: #{tpu_custom_call.1} parent=1 // pred_region
      %661 = vsyncadd [#allocation4], 0
      %s663 = sshll.u32 [#allocation8], 4
      %s664 = int_to_ptr.vmem [resolvable:$true] %s663
      %s665 = sshll.u32 %s7, 4
      %s666 = int_to_ptr.hbm [resolvable:$true] %s665
      %668 = dma.vmem_to_hbm [thread:$0]  %s664, 128, %s666, [#allocation4]
    $region45: #{tpu_custom_call.1} parent=1 // pred_fallthru
      _
    // Predicated region
    $region46: #{tpu_custom_call.1} parent=1 // pred_check
      _
    $region47: #{tpu_custom_call.1} parent=1 // pred_check_branch
      %670 = sbr.rel (0) target = $region49
    $region48: #{tpu_custom_call.1} parent=1 // pred_region
      %672 = dma.done [#allocation4], 128
    $region49: #{tpu_custom_call.1} parent=1 // pred_fallthru
      _
    %673 = vsyncpa [#allocation3], 1
    %674 = vsyncpa [#allocation6], 1
    %675 = vsyncpa [#allocation4], 1

</llo_original>
